<compile_context>
chip_gen: v5e
topology: v5e:2x2
jax: 0.10.0
libtpu: 0.0.40
codegen_flags: <defaults>
</compile_context>

<pallas_src>
import functools
import math

import jax
import jax.numpy as jnp
import numpy as np
from jax.experimental import pallas as pl
from jax.experimental.pallas import tpu as pltpu


# ----------------------------- Pallas kernel ------------------------------ #

def _sdpa_kernel(*refs, head_dim, q_tile, has_mask):
    if has_mask:
        (x_ref,       # (1, S, H)      bf16, full sequence of this batch elem
         mask_ref,    # (1, S, S)      f32 additive mask
         wqkv_ref,    # (1, H, 3*hd)   bf16, this head's q/k/v projection
         wo_ref,      # (1, hd, H)     bf16, this head's slice of o_proj
         out_ref,     # (1, S, H)      output (input dtype)
         acc_ref,     # (S, H)         f32 cross-head accumulator (scratch)
         q_s) = refs  # (S, hd)        bf16 scaled-Q scratch for q-tiling
    else:
        (x_ref, wqkv_ref, wo_ref, out_ref, acc_ref, q_s) = refs
        mask_ref = None

    f32 = jnp.float32
    bf16 = jnp.bfloat16
    h_idx = pl.program_id(1)
    seq = x_ref.shape[1]
    n_q = seq // q_tile
    scale = 1.0 / math.sqrt(head_dim)

    # Zero the cross-head output accumulator on the first head.
    @pl.when(h_idx == 0)
    def _():
        acc_ref[...] = jnp.zeros_like(acc_ref)

    # Per-head Q/K/V projection: (S, H) @ (H, 3*hd) on the MXU, bf16 in / f32 acc.
    qkv = jnp.dot(x_ref[0], wqkv_ref[0], preferred_element_type=f32)   # (S, 3*hd)
    # Fold the 1/sqrt(hd) scale into Q; stash Q in VMEM so q-tiles can be
    # sliced dynamically inside the fori_loop.
    q_s[...] = (qkv[:, :head_dim] * scale).astype(bf16)
    k = qkv[:, head_dim:2 * head_dim].astype(bf16)                     # (S, hd)
    v = qkv[:, 2 * head_dim:].astype(bf16)                             # (S, hd)
    wo = wo_ref[0]                                                     # (hd, H)

    def q_step(i, carry):
        start = pl.multiple_of(i * q_tile, q_tile)
        q_t = q_s[pl.ds(start, q_tile), :]                             # (TQ, hd)
        # QK^T as a transposed contraction: no explicit transpose of K.
        s = jax.lax.dot_general(q_t, k, (((1,), (1,)), ((), ())),
                                preferred_element_type=f32)            # (TQ, S)
        if has_mask:
            s = s + mask_ref[0, pl.ds(start, q_tile), :].astype(f32)
        m = jnp.max(s, axis=-1, keepdims=True)
        p = jnp.exp(s - m)
        denom = jnp.sum(p, axis=-1, keepdims=True)
        p = p * pl.reciprocal(denom, approx=True)
        ctx = jnp.dot(p.astype(bf16), v, preferred_element_type=f32)   # (TQ, hd)
        # Fold the head merge into the O projection and accumulate over heads.
        acc_ref[pl.ds(start, q_tile), :] += jnp.dot(
            ctx.astype(bf16), wo, preferred_element_type=f32)          # (TQ, H)
        return carry

    jax.lax.fori_loop(0, n_q, q_step, 0, unroll=(n_q <= 8))

    # Last head: write the accumulated o_proj output once, lane-dense (H).
    @pl.when(h_idx == pl.num_programs(1) - 1)
    def _():
        out_ref[0] = acc_ref[...].astype(out_ref.dtype)


# ------------------------------- Wrappers ---------------------------------- #

def prepare_mllama_sdpa_weights(params, *, num_heads):
    """Pack PyTorch-layout weights ([out, in]) into per-head bf16 [in, out]
    blocks once, outside the per-call path (no per-call transpose/concat)."""
    H = params["q_w"].shape[1]
    hd = H // num_heads

    def per_head_cols(w):                 # (H_out, H_in) -> (nh, H_in, hd)
        return w.T.reshape(H, num_heads, hd).transpose(1, 0, 2)

    wqkv = jnp.concatenate(
        [per_head_cols(params["q_w"]),
         per_head_cols(params["k_w"]),
         per_head_cols(params["v_w"])], axis=-1).astype(jnp.bfloat16)   # (nh, H, 3*hd)
    wo = params["o_w"].T.reshape(num_heads, hd, H).astype(jnp.bfloat16)  # (nh, hd, H)
    return {"wqkv": wqkv, "wo": wo}


def _pick_q_tile(S):
    for t in (512, 256, 128, 64, 32, 16, 8):
        if S % t == 0:
            return t
    # TODO(synk): pad + column-mask ragged sequence lengths instead of falling
    # back to a single full-S query tile.
    return S


@functools.partial(jax.jit, static_argnames=("num_heads", "q_tile"))
def mllama_vision_sdpa_attention(hidden_state, attention_mask, packed_weights,
                                 *, num_heads, q_tile=None):
    """hidden_state: (B, S, H). attention_mask: (B, 1, S, S) additive or None."""
    B, S, H = hidden_state.shape
    hd = H // num_heads
    if q_tile is None or S % q_tile != 0:
        q_tile = _pick_q_tile(S)

    x = hidden_state.astype(jnp.bfloat16)
    wqkv = packed_weights["wqkv"]
    wo = packed_weights["wo"]

    has_mask = attention_mask is not None
    kernel = functools.partial(_sdpa_kernel, head_dim=hd, q_tile=q_tile,
                               has_mask=has_mask)

    in_specs = [pl.BlockSpec((1, S, H), lambda b, h: (b, 0, 0))]        # x
    args = [x]
    if has_mask:
        mask = jnp.broadcast_to(
            attention_mask.astype(jnp.float32), (B, 1, S, S)).reshape(B, S, S)
        in_specs.append(pl.BlockSpec((1, S, S), lambda b, h: (b, 0, 0)))
        args.append(mask)
    in_specs += [
        pl.BlockSpec((1, H, 3 * hd), lambda b, h: (h, 0, 0)),           # wqkv
        pl.BlockSpec((1, hd, H), lambda b, h: (h, 0, 0)),               # wo
    ]
    args += [wqkv, wo]

    # Size the scoped VMEM limit from the actual working set (+50% headroom).
    out_itemsize = jnp.dtype(hidden_state.dtype).itemsize
    est = (2 * S * H * 2             # x (double-buffered, bf16)
           + 2 * H * 3 * hd * 2      # wqkv block
           + 2 * hd * H * 2          # wo block
           + 2 * S * H * out_itemsize
           + (2 * S * S * 4 if has_mask else 0)
           + S * H * 4               # f32 accumulator scratch
           + S * hd * 2)             # q scratch
    vmem_limit = int(min(96 * 2**20, max(32 * 2**20, est * 3 // 2)))

    grid_spec = pltpu.PrefetchScalarGridSpec(
        num_scalar_prefetch=0,
        grid=(B, num_heads),
        in_specs=in_specs,
        out_specs=pl.BlockSpec((1, S, H), lambda b, h: (b, 0, 0)),
        scratch_shapes=[
            pltpu.VMEM((S, H), jnp.float32),     # cross-head output accumulator
            pltpu.VMEM((S, hd), jnp.bfloat16),   # scaled Q for dynamic q-tiling
        ],
    )

    return pl.pallas_call(
        kernel,
        out_shape=jax.ShapeDtypeStruct((B, S, H), hidden_state.dtype),
        grid_spec=grid_spec,
        compiler_params=pltpu.CompilerParams(
            dimension_semantics=("parallel", "arbitrary"),
            vmem_limit_bytes=vmem_limit),
    )(*args)


# --------------------------- pure-JAX reference ----------------------------- #

def _reference(hidden_state, attention_mask, params, *, num_heads):
    B, S, H = hidden_state.shape
    hd = H // num_heads
    q = hidden_state @ params["q_w"].T
    k = hidden_state @ params["k_w"].T
    v = hidden_state @ params["v_w"].T
    q = q.reshape(B, S, num_heads, hd).transpose(0, 2, 1, 3)
    k = k.reshape(B, S, num_heads, hd).transpose(0, 2, 1, 3)
    v = v.reshape(B, S, num_heads, hd).transpose(0, 2, 1, 3)
    s = jnp.einsum("bhqd,bhkd->bhqk", q, k) / math.sqrt(hd)
    if attention_mask is not None:
        s = s + attention_mask
    p = jax.nn.softmax(s, axis=-1)
    o = jnp.einsum("bhqk,bhkd->bhqd", p, v)
    o = o.transpose(0, 2, 1, 3).reshape(B, S, H)
    return o @ params["o_w"].T


# ---------------------------------- main ------------------------------------ #

if __name__ == "__main__":
    B, S, H = 2, 16, 32
    NUM_HEADS = 4

    key = jax.random.PRNGKey(0)
    ks = jax.random.split(key, 6)
    wscale = 0.05
    params = {
        "q_w": wscale * jax.random.normal(ks[0], (H, H), jnp.float32),
        "k_w": wscale * jax.random.normal(ks[1], (H, H), jnp.float32),
        "v_w": wscale * jax.random.normal(ks[2], (H, H), jnp.float32),
        "o_w": wscale * jax.random.normal(ks[3], (H, H), jnp.float32),
    }
    x = jax.random.normal(ks[4], (B, S, H), jnp.float32)
    mask = jax.random.normal(ks[5], (B, 1, S, S), jnp.float32)

    packed = prepare_mllama_sdpa_weights(params, num_heads=NUM_HEADS)

    # attention_mask=None path (no mask materialized / DMA'd).
    out_nomask = jax.block_until_ready(
        mllama_vision_sdpa_attention(x, None, packed,
                                     num_heads=NUM_HEADS, q_tile=8))
    ref_nomask = jax.block_until_ready(
        _reference(x, None, params, num_heads=NUM_HEADS))
    np.testing.assert_allclose(np.asarray(out_nomask), np.asarray(ref_nomask),
                               rtol=2e-2, atol=2e-2)

    # additive-mask path.
    out_mask = jax.block_until_ready(
        mllama_vision_sdpa_attention(x, mask, packed,
                                     num_heads=NUM_HEADS, q_tile=8))
    ref_mask = jax.block_until_ready(
        _reference(x, mask, params, num_heads=NUM_HEADS))
    np.testing.assert_allclose(np.asarray(out_mask), np.asarray(ref_mask),
                               rtol=2e-2, atol=2e-2)

    print("KERNEL_OK")
</pallas_src>

<mosaic_0001>
module attributes {stable_mosaic.version = 11 : i64} {
  func.func @_sdpa_kernel(%arg0: i32, %arg1: i32, %arg2: memref<1x16x32xbf16, #tpu.memory_space<vmem>>, %arg3: memref<1x32x24xbf16, #tpu.memory_space<vmem>>, %arg4: memref<1x8x32xbf16, #tpu.memory_space<vmem>>, %arg5: memref<1x16x32xf32, #tpu.memory_space<vmem>>, %arg6: memref<16x32xf32, #tpu.memory_space<vmem>>, %arg7: memref<16x8xbf16, #tpu.memory_space<vmem>>) attributes {dimension_semantics = [#tpu.dimension_semantics<parallel>, #tpu.dimension_semantics<arbitrary>], iteration_bounds = array<i64: 2, 4>, scalar_prefetch = 0 : i64, scratch_operands = 2 : i64, tpu.core_type = #tpu.core_type<tc>, window_params = [{transform_indices = @transform_0, window_bounds = array<i64: 1, 16, 32>}, {transform_indices = @transform_1, window_bounds = array<i64: 1, 32, 24>}, {transform_indices = @transform_2, window_bounds = array<i64: 1, 8, 32>}, {transform_indices = @transform_3, window_bounds = array<i64: 1, 16, 32>}]} {
    %c0_i32 = arith.constant 0 : i32
    %0 = arith.cmpi eq, %arg1, %c0_i32 : i32
    %1 = arith.extui %0 : i1 to i32
    %c0_i32_0 = arith.constant 0 : i32
    %2 = arith.cmpi ne, %1, %c0_i32_0 : i32
    scf.if %2 {
      %cst_31 = arith.constant 0.000000e+00 : f32
      %70 = vector.broadcast %cst_31 : f32 to vector<16x32xf32>
      %c0_32 = arith.constant 0 : index
      %c0_33 = arith.constant 0 : index
      %71 = vector.load %arg6[%c0_32, %c0_33] : memref<16x32xf32, #tpu.memory_space<vmem>>, vector<16x32xf32>
      tpu.vector_store %arg6[%c0_32, %c0_33], %70 {strides = array<i32>} : memref<16x32xf32, #tpu.memory_space<vmem>>, vector<16x32xf32>,
    } else {
    }
    %c0 = arith.constant 0 : index
    %c0_1 = arith.constant 0 : index
    %c0_2 = arith.constant 0 : index
    %3 = vector.load %arg2[%c0, %c0_1, %c0_2] : memref<1x16x32xbf16, #tpu.memory_space<vmem>>, vector<1x16x32xbf16>
    %4 = vector.shape_cast %3 : vector<1x16x32xbf16> to vector<16x32xbf16>
    %c0_3 = arith.constant 0 : index
    %c0_4 = arith.constant 0 : index
    %c0_5 = arith.constant 0 : index
    %5 = vector.load %arg3[%c0_3, %c0_4, %c0_5] : memref<1x32x24xbf16, #tpu.memory_space<vmem>>, vector<1x32x24xbf16>
    %6 = vector.shape_cast %5 : vector<1x32x24xbf16> to vector<32x24xbf16>
    %cst = arith.constant dense<0.000000e+00> : vector<16x24xf32>
    %7 = tpu.matmul %4, %6, %cst {dimension_numbers = #tpu.dot_dimension_numbers<[1], [0], [0], [1], [0, 0, 1, 1], [], []>} : vector<16x32xbf16>, vector<32x24xbf16>, vector<16x24xf32> -> vector<16x24xf32>
    %8 = vector.extract_strided_slice %7 {offsets = [0, 0], sizes = [16, 8], strides = [1, 1]} : vector<16x24xf32> to vector<16x8xf32>
    %cst_6 = arith.constant 0.353553385 : f32
    %9 = vector.broadcast %cst_6 : f32 to vector<16x8xf32>
    %10 = arith.mulf %8, %9 : vector<16x8xf32>
    %11 = arith.truncf %10 : vector<16x8xf32> to vector<16x8xbf16>
    %c0_7 = arith.constant 0 : index
    %c0_8 = arith.constant 0 : index
    %12 = vector.load %arg7[%c0_7, %c0_8] : memref<16x8xbf16, #tpu.memory_space<vmem>>, vector<16x8xbf16>
    tpu.vector_store %arg7[%c0_7, %c0_8], %11 {strides = array<i32>} : memref<16x8xbf16, #tpu.memory_space<vmem>>, vector<16x8xbf16>,
    %13 = vector.extract_strided_slice %7 {offsets = [0, 8], sizes = [16, 8], strides = [1, 1]} : vector<16x24xf32> to vector<16x8xf32>
    %14 = arith.truncf %13 : vector<16x8xf32> to vector<16x8xbf16>
    %15 = vector.extract_strided_slice %7 {offsets = [0, 16], sizes = [16, 8], strides = [1, 1]} : vector<16x24xf32> to vector<16x8xf32>
    %16 = arith.truncf %15 : vector<16x8xf32> to vector<16x8xbf16>
    %c0_9 = arith.constant 0 : index
    %c0_10 = arith.constant 0 : index
    %c0_11 = arith.constant 0 : index
    %17 = vector.load %arg4[%c0_9, %c0_10, %c0_11] : memref<1x8x32xbf16, #tpu.memory_space<vmem>>, vector<1x8x32xbf16>
    %18 = vector.shape_cast %17 : vector<1x8x32xbf16> to vector<8x32xbf16>
    %c0_i32_12 = arith.constant 0 : i32
    %c8_i32 = arith.constant 8 : i32
    %19 = arith.muli %c0_i32_12, %c8_i32 : i32
    %20 = tpu.assume_multiple %19, 8 : i32
    %21 = arith.index_cast %20 : i32 to index
    %c0_13 = arith.constant 0 : index
    %22 = vector.load %arg7[%21, %c0_13] : memref<16x8xbf16, #tpu.memory_space<vmem>>, vector<8x8xbf16>
    %cst_14 = arith.constant dense<0.000000e+00> : vector<8x16xf32>
    %23 = tpu.matmul %22, %14, %cst_14 {dimension_numbers = #tpu.dot_dimension_numbers<[1], [1], [0], [0], [0, 0, 1, 0], [], []>} : vector<8x8xbf16>, vector<16x8xbf16>, vector<8x16xf32> -> vector<8x16xf32>
    %cst_15 = arith.constant dense<0xFF800000> : vector<8xf32>
    %24 = vector.multi_reduction <maximumf>, %23, %cst_15 [1] : vector<8x16xf32> to vector<8xf32>
    %25 = vector.shape_cast %24 : vector<8xf32> to vector<8x1xf32>
    %26 = vector.broadcast %25 : vector<8x1xf32> to vector<8x16xf32>
    %27 = arith.subf %23, %26 : vector<8x16xf32>
    %28 = math.exp %27 : vector<8x16xf32>
    %cst_16 = arith.constant dense<0.000000e+00> : vector<8xf32>
    %29 = vector.multi_reduction <add>, %28, %cst_16 [1] : vector<8x16xf32> to vector<8xf32>
    %30 = vector.shape_cast %29 : vector<8xf32> to vector<8x1xf32>
    %31 = tpu.reciprocal %30 {approx = true} : vector<8x1xf32> -> vector<8x1xf32>
    %32 = vector.broadcast %31 : vector<8x1xf32> to vector<8x16xf32>
    %33 = arith.mulf %28, %32 : vector<8x16xf32>
    %34 = arith.truncf %33 : vector<8x16xf32> to vector<8x16xbf16>
    %cst_17 = arith.constant dense<0.000000e+00> : vector<8x8xf32>
    %35 = tpu.matmul %34, %16, %cst_17 {dimension_numbers = #tpu.dot_dimension_numbers<[1], [0], [0], [1], [0, 0, 1, 1], [], []>} : vector<8x16xbf16>, vector<16x8xbf16>, vector<8x8xf32> -> vector<8x8xf32>
    %36 = arith.index_cast %20 : i32 to index
    %c0_18 = arith.constant 0 : index
    %37 = vector.load %arg6[%36, %c0_18] : memref<16x32xf32, #tpu.memory_space<vmem>>, vector<8x32xf32>
    %38 = arith.truncf %35 : vector<8x8xf32> to vector<8x8xbf16>
    %cst_19 = arith.constant dense<0.000000e+00> : vector<8x32xf32>
    %39 = tpu.matmul %38, %18, %cst_19 {dimension_numbers = #tpu.dot_dimension_numbers<[1], [0], [0], [1], [0, 0, 1, 1], [], []>} : vector<8x8xbf16>, vector<8x32xbf16>, vector<8x32xf32> -> vector<8x32xf32>
    %40 = arith.addf %37, %39 : vector<8x32xf32>
    %41 = arith.index_cast %20 : i32 to index
    %c0_20 = arith.constant 0 : index
    %42 = vector.load %arg6[%41, %c0_20] : memref<16x32xf32, #tpu.memory_space<vmem>>, vector<8x32xf32>
    tpu.vector_store %arg6[%41, %c0_20], %40 {strides = array<i32>} : memref<16x32xf32, #tpu.memory_space<vmem>>, vector<8x32xf32>,
    %c1_i32 = arith.constant 1 : i32
    %c8_i32_21 = arith.constant 8 : i32
    %43 = arith.muli %c1_i32, %c8_i32_21 : i32
    %44 = tpu.assume_multiple %43, 8 : i32
    %45 = arith.index_cast %44 : i32 to index
    %c0_22 = arith.constant 0 : index
    %46 = vector.load %arg7[%45, %c0_22] : memref<16x8xbf16, #tpu.memory_space<vmem>>, vector<8x8xbf16>
    %cst_23 = arith.constant dense<0.000000e+00> : vector<8x16xf32>
    %47 = tpu.matmul %46, %14, %cst_23 {dimension_numbers = #tpu.dot_dimension_numbers<[1], [1], [0], [0], [0, 0, 1, 0], [], []>} : vector<8x8xbf16>, vector<16x8xbf16>, vector<8x16xf32> -> vector<8x16xf32>
    %cst_24 = arith.constant dense<0xFF800000> : vector<8xf32>
    %48 = vector.multi_reduction <maximumf>, %47, %cst_24 [1] : vector<8x16xf32> to vector<8xf32>
    %49 = vector.shape_cast %48 : vector<8xf32> to vector<8x1xf32>
    %50 = vector.broadcast %49 : vector<8x1xf32> to vector<8x16xf32>
    %51 = arith.subf %47, %50 : vector<8x16xf32>
    %52 = math.exp %51 : vector<8x16xf32>
    %cst_25 = arith.constant dense<0.000000e+00> : vector<8xf32>
    %53 = vector.multi_reduction <add>, %52, %cst_25 [1] : vector<8x16xf32> to vector<8xf32>
    %54 = vector.shape_cast %53 : vector<8xf32> to vector<8x1xf32>
    %55 = tpu.reciprocal %54 {approx = true} : vector<8x1xf32> -> vector<8x1xf32>
    %56 = vector.broadcast %55 : vector<8x1xf32> to vector<8x16xf32>
    %57 = arith.mulf %52, %56 : vector<8x16xf32>
    %58 = arith.truncf %57 : vector<8x16xf32> to vector<8x16xbf16>
    %cst_26 = arith.constant dense<0.000000e+00> : vector<8x8xf32>
    %59 = tpu.matmul %58, %16, %cst_26 {dimension_numbers = #tpu.dot_dimension_numbers<[1], [0], [0], [1], [0, 0, 1, 1], [], []>} : vector<8x16xbf16>, vector<16x8xbf16>, vector<8x8xf32> -> vector<8x8xf32>
    %60 = arith.index_cast %44 : i32 to index
    %c0_27 = arith.constant 0 : index
    %61 = vector.load %arg6[%60, %c0_27] : memref<16x32xf32, #tpu.memory_space<vmem>>, vector<8x32xf32>
    %62 = arith.truncf %59 : vector<8x8xf32> to vector<8x8xbf16>
    %cst_28 = arith.constant dense<0.000000e+00> : vector<8x32xf32>
    %63 = tpu.matmul %62, %18, %cst_28 {dimension_numbers = #tpu.dot_dimension_numbers<[1], [0], [0], [1], [0, 0, 1, 1], [], []>} : vector<8x8xbf16>, vector<8x32xbf16>, vector<8x32xf32> -> vector<8x32xf32>
    %64 = arith.addf %61, %63 : vector<8x32xf32>
    %65 = arith.index_cast %44 : i32 to index
    %c0_29 = arith.constant 0 : index
    %66 = vector.load %arg6[%65, %c0_29] : memref<16x32xf32, #tpu.memory_space<vmem>>, vector<8x32xf32>
    tpu.vector_store %arg6[%65, %c0_29], %64 {strides = array<i32>} : memref<16x32xf32, #tpu.memory_space<vmem>>, vector<8x32xf32>,
    %c2_i32 = arith.constant 2 : i32
    %c3_i32 = arith.constant 3 : i32
    %67 = arith.cmpi eq, %arg1, %c3_i32 : i32
    %68 = arith.extui %67 : i1 to i32
    %c0_i32_30 = arith.constant 0 : i32
    %69 = arith.cmpi ne, %68, %c0_i32_30 : i32
    scf.if %69 {
      %c0_31 = arith.constant 0 : index
      %c0_32 = arith.constant 0 : index
      %70 = vector.load %arg6[%c0_31, %c0_32] : memref<16x32xf32, #tpu.memory_space<vmem>>, vector<16x32xf32>
      %c0_33 = arith.constant 0 : index
      %c0_34 = arith.constant 0 : index
      %c0_35 = arith.constant 0 : index
      %71 = vector.load %arg5[%c0_33, %c0_34, %c0_35] : memref<1x16x32xf32, #tpu.memory_space<vmem>>, vector<1x16x32xf32>
      %72 = vector.shape_cast %71 : vector<1x16x32xf32> to vector<16x32xf32>
      %73 = vector.shape_cast %70 : vector<16x32xf32> to vector<1x16x32xf32>
      tpu.vector_store %arg5[%c0_33, %c0_34, %c0_35], %73 {strides = array<i32>} : memref<1x16x32xf32, #tpu.memory_space<vmem>>, vector<1x16x32xf32>,
    } else {
    }
    return
  }
  func.func @transform_0(%arg0: i32, %arg1: i32) -> (i32, i32, i32) {
    %c0_i32 = arith.constant 0 : i32
    %c0_i32_0 = arith.constant 0 : i32
    %c0_i32_1 = arith.constant 0 : i32
    return %arg0, %c0_i32, %c0_i32_0 : i32, i32, i32
  }
  func.func @transform_1(%arg0: i32, %arg1: i32) -> (i32, i32, i32) {
    %c0_i32 = arith.constant 0 : i32
    %c0_i32_0 = arith.constant 0 : i32
    %c0_i32_1 = arith.constant 0 : i32
    return %arg1, %c0_i32, %c0_i32_0 : i32, i32, i32
  }
  func.func @transform_2(%arg0: i32, %arg1: i32) -> (i32, i32, i32) {
    %c0_i32 = arith.constant 0 : i32
    %c0_i32_0 = arith.constant 0 : i32
    %c0_i32_1 = arith.constant 0 : i32
    return %arg1, %c0_i32, %c0_i32_0 : i32, i32, i32
  }
  func.func @transform_3(%arg0: i32, %arg1: i32) -> (i32, i32, i32) {
    %c0_i32 = arith.constant 0 : i32
    %c0_i32_0 = arith.constant 0 : i32
    %c0_i32_1 = arith.constant 0 : i32
    return %arg0, %c0_i32, %c0_i32_0 : i32, i32, i32
  }
}

</mosaic_0001>

<llo_original>
// kernel: mllama_vision_sdpa_attention.1
$region0: #{mllama_vision_sdpa_attention.1}
  #allocation0 [shape = 'u32[]', space=smem, size = 0x4, offset = 0x4, fixed_abs, tag = 'smem constant byte address 0x4 - core index']
  #allocation1 [shape = 'u32[72,128]{1,0:T(1,128)}', space=vmem, size = 0x9000, scoped, tag = 'internal scratch']
  #allocation2 [shape = 'f32[16,32]{1,0:T(8,128)}', space=vmem, size = 0x2000, scoped, tag = 'scratch operand']
  #allocation3 [shape = 'bf16[16,8]{1,0:T(8,128)(2,1)}', space=vmem, size = 0x1000, scoped, tag = 'scratch operand']
  %s0 = inlined_call_operand.vmem [shape: bf16[2,16,32], index: 0, kind: input, shape index: {}]
  %s1 = inlined_call_operand.vmem [shape: bf16[4,32,24], index: 1, kind: input, shape index: {}]
  %s2 = inlined_call_operand.vmem [shape: bf16[4,8,32], index: 2, kind: input, shape index: {}]
  %s3 = inlined_call_operand.hbm [shape: f32[2,16,32], index: 3, kind: output, shape index: {}]
  %s4 = sld [smem:[#allocation0]]
  $region53: #{mllama_vision_sdpa_attention.1} parent=0
    _
  %s6 = ssub.s32 1, %s4
  %s7 = scalar_select 0, %s6, %s4
  $region1: #{mllama_vision_sdpa_attention.1} parent=0
    #allocation4 [shape = 'u8[16384]{0}', space=vmem, size = 0x4000, scoped, tag = 'output window, operand 0']
    #allocation5 [shape = 's32[2]{0}', space=sflag, size = 0x8, scoped, tag = 'scoped memory for mllama_vision_sdpa_attention.1']
    %8 = vsyncpa [#allocation5], 0
    %s9 = scalar_lea.sflag [#allocation5], 1
    %10 = vsyncpa %s9, 0
    loop: start=0, step=1, limit=10
    $region2: #{mllama_vision_sdpa_attention.1} parent=1 // loop_pre_header
      _
    $region3: #{mllama_vision_sdpa_attention.1} parent=1 // loop_header
      %s12 = sphi 0, %s16
      %p13 = scmp.ge.s32.totalorder %s12, 10
      %s19 = sphi 0, %s31
      %s20 = sphi 0, %s27
      %s21 = sphi 0, %s19
      %s22 = sphi 0, %s20
      %s23 = sphi 0, %s21
      %s24 = sphi 0, %s22
      %s34 = sphi 0, %s36
      %s37 = sphi 0, %s34
      %s38 = sphi 0, %s37
      %s54 = sphi 0, %s38
      %s60 = sphi 0, %s62
      %s63 = sphi 0, %s60
      %s64 = sphi 0, %s63
      %s80 = sphi 0, %s64
      %s86 = sphi 0, %s88
      %s89 = sphi 0, %s86
      %s90 = sphi 0, %s89
      %s106 = sphi 0, %s90
      %s112 = sphi 0, %s114
      %s115 = sphi 0, %s112
      %s116 = sphi 0, %s115
      %s132 = sphi 0, %s116
    $region4: #{mllama_vision_sdpa_attention.1} parent=1 // loop_header_branch
      %15 = sbr.rel (%p13) target = $region8
    $region5: #{mllama_vision_sdpa_attention.1} parent=1 // loop_body
      %s17 = ssub.s32 %s12, 1
      %s18 = ssub.s32 %s12, 2
      %s25 = sadd.s32 1, %s20
      %p26 = scmp.ge.s32.totalorder %s25, 4
      %s27 = scalar_select %p26, 0, %s25
      %s28 = sadd.s32 1, %s19
      %s29 = scalar_select %p26, %s28, %s19
      %p30 = scmp.ge.s32.totalorder %s29, 2
      %s31 = scalar_select %p30, 0, %s29
      %s32 = ssub.s32 %s19, %s31
      %p33 = scmp.eq.s32.totalorder %s32, 0
      %s35 = sadd.s32 %s34, 1
      %s36 = scalar_select %p33, %s34, %s35
      %p39 = pneg %p33
      %p40 = scmp.eq.s32.totalorder %s12, 7
      %p41 = por %p39, %p40
      %p42 = scmp.ne.s32.totalorder %s34, %s37
      %p43 = scmp.eq.s32.totalorder %s12, 0
      %p44 = por %p42, %p43
      %p45 = scmp.ne.s32.totalorder %s34, %s37
      %p46 = scmp.eq.s32.totalorder %s17, 7
      %p47 = por %p45, %p46
      %p48 = scmp.ne.s32.totalorder %s37, %s38
      %p49 = scmp.eq.s32.totalorder %s17, 0
      %p50 = por %p48, %p49
      %p51 = scmp.ne.s32.totalorder %s37, %s38
      %p52 = scmp.eq.s32.totalorder %s18, 7
      %p53 = por %p51, %p52
      %p55 = scmp.ne.s32.totalorder %s38, %s54
      %p56 = scmp.eq.s32.totalorder %s18, 0
      %p57 = por %p55, %p56
      %s58 = ssub.s32 %s20, %s27
      %p59 = scmp.eq.s32.totalorder %s58, 0
      %s61 = sadd.s32 %s60, 1
      %s62 = scalar_select %p59, %s60, %s61
      %p65 = pneg %p59
      %p66 = scmp.eq.s32.totalorder %s12, 7
      %p67 = por %p65, %p66
      %p68 = scmp.ne.s32.totalorder %s60, %s63
      %p69 = scmp.eq.s32.totalorder %s12, 0
      %p70 = por %p68, %p69
      %p71 = scmp.ne.s32.totalorder %s60, %s63
      %p72 = scmp.eq.s32.totalorder %s17, 7
      %p73 = por %p71, %p72
      %p74 = scmp.ne.s32.totalorder %s63, %s64
      %p75 = scmp.eq.s32.totalorder %s17, 0
      %p76 = por %p74, %p75
      %p77 = scmp.ne.s32.totalorder %s63, %s64
      %p78 = scmp.eq.s32.totalorder %s18, 7
      %p79 = por %p77, %p78
      %p81 = scmp.ne.s32.totalorder %s64, %s80
      %p82 = scmp.eq.s32.totalorder %s18, 0
      %p83 = por %p81, %p82
      %s84 = ssub.s32 %s20, %s27
      %p85 = scmp.eq.s32.totalorder %s84, 0
      %s87 = sadd.s32 %s86, 1
      %s88 = scalar_select %p85, %s86, %s87
      %p91 = pneg %p85
      %p92 = scmp.eq.s32.totalorder %s12, 7
      %p93 = por %p91, %p92
      %p94 = scmp.ne.s32.totalorder %s86, %s89
      %p95 = scmp.eq.s32.totalorder %s12, 0
      %p96 = por %p94, %p95
      %p97 = scmp.ne.s32.totalorder %s86, %s89
      %p98 = scmp.eq.s32.totalorder %s17, 7
      %p99 = por %p97, %p98
      %p100 = scmp.ne.s32.totalorder %s89, %s90
      %p101 = scmp.eq.s32.totalorder %s17, 0
      %p102 = por %p100, %p101
      %p103 = scmp.ne.s32.totalorder %s89, %s90
      %p104 = scmp.eq.s32.totalorder %s18, 7
      %p105 = por %p103, %p104
      %p107 = scmp.ne.s32.totalorder %s90, %s106
      %p108 = scmp.eq.s32.totalorder %s18, 0
      %p109 = por %p107, %p108
      %s110 = ssub.s32 %s19, %s31
      %p111 = scmp.eq.s32.totalorder %s110, 0
      %s113 = sadd.s32 %s112, 1
      %s114 = scalar_select %p111, %s112, %s113
      %p117 = pneg %p111
      %p118 = scmp.eq.s32.totalorder %s12, 7
      %p119 = por %p117, %p118
      %p120 = scmp.ne.s32.totalorder %s112, %s115
      %p121 = scmp.eq.s32.totalorder %s12, 0
      %p122 = por %p120, %p121
      %p123 = scmp.ne.s32.totalorder %s112, %s115
      %p124 = scmp.eq.s32.totalorder %s17, 7
      %p125 = por %p123, %p124
      %p126 = scmp.ne.s32.totalorder %s115, %s116
      %p127 = scmp.eq.s32.totalorder %s17, 0
      %p128 = por %p126, %p127
      %p129 = scmp.ne.s32.totalorder %s115, %s116
      %p130 = scmp.eq.s32.totalorder %s18, 7
      %p131 = por %p129, %p130
      %p133 = scmp.ne.s32.totalorder %s116, %s132
      %p134 = scmp.eq.s32.totalorder %s18, 0
      %p135 = por %p133, %p134
      %p136 = scmp.le.s32.totalorder 1, %s12
      %p137 = scmp.lt.s32.totalorder %s12, 9
      %p138 = pnand %p136, %p137
      %p139 = pneg %p138
      // Predicated region
      $region9: #{mllama_vision_sdpa_attention.1} parent=5 // pred_check
        _
      $region10: #{mllama_vision_sdpa_attention.1} parent=5 // pred_check_branch
        %141 = sbr.rel (%p138) target = $region12
      $region11: #{mllama_vision_sdpa_attention.1} parent=5 // pred_region
        %s142 = ssub.s32 %s12, 1
      $region12: #{mllama_vision_sdpa_attention.1} parent=5 // pred_fallthru
        _
      %p143 = scmp.lt.s32.totalorder %s12, 8
      // Predicated region
      $region13: #{mllama_vision_sdpa_attention.1} parent=5 // pred_check
        %p144 = pneg %p143
      $region14: #{mllama_vision_sdpa_attention.1} parent=5 // pred_check_branch
        %146 = sbr.rel (%p144) target = $region16
      $region15: #{mllama_vision_sdpa_attention.1} parent=5 // pred_region
        // Predicated region
        $region17: #{mllama_vision_sdpa_attention.1} parent=15 // pred_check
          %p147 = pneg %p44
        $region18: #{mllama_vision_sdpa_attention.1} parent=15 // pred_check_branch
          %149 = sbr.rel (%p147) target = $region20
        $region19: #{mllama_vision_sdpa_attention.1} parent=15 // pred_region
          %p150 = scmp.lt.s32.totalorder %s19, 1
          %s151 = scalar_select %p150, %s19, 1
          %s152 = smul.addr %s151, 2
          %s153 = smul.addr %s152, 4
          %s154 = scalar_lea.vmem %s0, %s153
        $region20: #{mllama_vision_sdpa_attention.1} parent=15 // pred_fallthru
          _
        // Predicated region
        $region21: #{mllama_vision_sdpa_attention.1} parent=15 // pred_check
          %p155 = pneg %p70
        $region22: #{mllama_vision_sdpa_attention.1} parent=15 // pred_check_branch
          %157 = sbr.rel (%p155) target = $region24
        $region23: #{mllama_vision_sdpa_attention.1} parent=15 // pred_region
          %p158 = scmp.lt.s32.totalorder %s20, 3
          %s159 = scalar_select %p158, %s20, 3
          %s160 = smul.addr %s159, 4
          %s161 = smul.addr %s160, 4
          %s162 = scalar_lea.vmem %s1, %s161
        $region24: #{mllama_vision_sdpa_attention.1} parent=15 // pred_fallthru
          _
        // Predicated region
        $region25: #{mllama_vision_sdpa_attention.1} parent=15 // pred_check
          %p163 = pneg %p96
        $region26: #{mllama_vision_sdpa_attention.1} parent=15 // pred_check_branch
          %165 = sbr.rel (%p163) target = $region28
        $region27: #{mllama_vision_sdpa_attention.1} parent=15 // pred_region
          %p166 = scmp.lt.s32.totalorder %s20, 3
          %s167 = scalar_select %p166, %s20, 3
          %s168 = smul.addr %s167, 4
          %s169 = scalar_lea.vmem %s2, %s168
        $region28: #{mllama_vision_sdpa_attention.1} parent=15 // pred_fallthru
          _
      $region16: #{mllama_vision_sdpa_attention.1} parent=5 // pred_fallthru
        _
      %p170 = scmp.le.s32.totalorder 1, %s12
      %p171 = scmp.lt.s32.totalorder %s12, 9
      %p172 = pnand %p170, %p171
      %p173 = pneg %p172
      // Predicated region
      $region29: #{mllama_vision_sdpa_attention.1} parent=5 // pred_check
        _
      $region30: #{mllama_vision_sdpa_attention.1} parent=5 // pred_check_branch
        %175 = sbr.rel (%p172) target = $region32
      $region31: #{mllama_vision_sdpa_attention.1} parent=5 // pred_region
        %s176 = ssub.s32 %s12, 1
        %p177 = scmp.lt.s32.totalorder %s21, 1
        %s178 = scalar_select %p177, %s21, 1
        %s179 = smul.addr %s178, 2
        %s180 = smul.addr %s179, 4
        %s181 = scalar_lea.vmem %s0, %s180
        %p182 = pneg %p50
        %p183 = pneg %p47
        %p184 = scmp.lt.s32.totalorder %s22, 3
        %s185 = scalar_select %p184, %s22, 3
        %s186 = smul.addr %s185, 4
        %s187 = smul.addr %s186, 4
        %s188 = scalar_lea.vmem %s1, %s187
        %p189 = pneg %p76
        %p190 = pneg %p73
        %p191 = scmp.lt.s32.totalorder %s22, 3
        %s192 = scalar_select %p191, %s22, 3
        %s193 = smul.addr %s192, 4
        %s194 = scalar_lea.vmem %s2, %s193
        %p195 = pneg %p102
        %p196 = pneg %p99
        %p197 = pneg %p128
        %p198 = pneg %p125
        %s199 = sand.u32 %s115, 1
        %s200 = scalar_lea.sflag [#allocation5], %s199
        %s201 = sand.u32 %s115, 1
        %s202 = smul.addr %s201, 16
        %s203 = scalar_lea.vmem [#allocation4], %s202
        %p204 = scmp.lt.s32.totalorder %s21, 1
        %s205 = scalar_select %p204, %s21, 1
        %s206 = smul.addr %s205, 2
        %s207 = smul.addr %s206, 4
        %s208 = scalar_lea.vmem %s0, %s207
        %p209 = scmp.lt.s32.totalorder %s22, 3
        %s210 = scalar_select %p209, %s22, 3
        %s211 = smul.addr %s210, 4
        %s212 = smul.addr %s211, 4
        %s213 = scalar_lea.vmem %s1, %s212
        %p214 = scmp.lt.s32.totalorder %s22, 3
        %s215 = scalar_select %p214, %s22, 3
        %s216 = smul.addr %s215, 4
        %s217 = scalar_lea.vmem %s2, %s216
        %p219 = scmp.eq.s32.totalorder %s22, 0
        // Predicated region
        $region33: #{mllama_vision_sdpa_attention.1} parent=31 // pred_check
          %p220 = pneg %p219
        $region34: #{mllama_vision_sdpa_attention.1} parent=31 // pred_check_branch
          %222 = sbr.rel (%p220) target = $region36
        $region35: #{mllama_vision_sdpa_attention.1} parent=31 // pred_region
          %vm223 = vcmask 261120
          %224 = vst.msk [vmem:[#allocation2] sm:$0xff] %vm223, 0.0
          %225 = vst.msk [vmem:[#allocation2 + $0x8] sm:$0xff] %vm223, 0.0
        $region36: #{mllama_vision_sdpa_attention.1} parent=31 // pred_fallthru
          _
        %v226 = vld [vmem:[%s208] sm:$0xf]
        %v227 = vld [vmem:[%s208 + $0x4] sm:$0xf]
        %v228 = vld [vmem:[%s213] sm:$0xf]
        %v229 = vld [vmem:[%s213 + $0x4] sm:$0xf]
        %v230 = vld [vmem:[%s213 + $0x8] sm:$0xf]
        %v231 = vld [vmem:[%s213 + $0xc] sm:$0xf]
        %v234 = vunpack.c.l.b16 %v226
        %v235 = vunpack.c.l.b16 %v227
        %v236 = vpack.c.b16 %v235, %v234
        %v241 = vunpack.c.l.b16 %v228
        %v242 = vunpack.c.l.b16 %v229
        %v243 = vunpack.c.l.b16 %v230
        %v244 = vunpack.c.l.b16 %v231
        %v245 = vpack.c.b16 %v242, %v241
        %v246 = vpack.c.b16 %v244, %v243
        %vm249 = vcmask 261120
        %v251 = vsel %vm249, %v236, 0
        %253 = vmatpush.bf16.msra.mxu0 0
        %254 = vmatpush.bf16.msra.mxu0 0
        %255 = vmatpush.bf16.msra.mxu0 0
        %256 = vmatpush.bf16.msra.mxu0 0
        %257 = vmatpush.bf16.msra.mxu0 0
        %258 = vmatpush.bf16.msra.mxu0 0
        %259 = vmatpush.bf16.msra.mxu0 %v246
        %260 = vmatpush.bf16.msra.mxu0 %v245
        %261 = vmatmul.bf16.gmra.mxu0 %v251
        %v262 = vpop.f32.mrf.mxu0
        %v263 = vadd.f32 0.0, %v262
        %v264 = vpop.f32.mrf.mxu0
        %v265 = vadd.f32 0.0, %v264
        %266 = vdwg.mxu0
        %v267 = vmul.f32 %v263, 0.35355338
        %v268 = vmul.f32 %v265, 0.35355338
        %v269 = vpack.c.bf16 %v267, %v267
        %v270 = vpack.c.bf16 %v268, %v268
        %vm271 = vcmask 60416
        %272 = vst.msk [vmem:[#allocation3] sm:$0xf] %vm271, %v269
        %273 = vst.msk [vmem:[#allocation3 + $0x4] sm:$0xf] %vm271, %v270
        %v274 = vpack.c.bf16 %v265, %v263
        %v275 = vld [vmem:[%s217] sm:$0xf]
        %v276 = vld [vmem:[#allocation3] sm:$0xf]
        %278 = vrot.lane.b32.xlu0 %v274, 120
        %v279 = vpop.permute.xlu0 %278
        %vm280 = vcmask 64512
        %v282 = vsel %vm280, %v276, 0
        %v285 = vsel %vm280, %v279, 0
        %287 = vmatpush.bf16.xpose.msra.mxu0 0
        %288 = vmatpush.bf16.xpose.msra.mxu0 0
        %289 = vmatpush.bf16.xpose.msra.mxu0 0
        %290 = vmatpush.bf16.xpose.msra.mxu0 0
        %291 = vmatpush.bf16.xpose.msra.mxu0 0
        %292 = vmatpush.bf16.xpose.msra.mxu0 0
        %293 = vmatpush.bf16.xpose.msra.mxu0 0
        %294 = vmatpush.bf16.xpose.msra.mxu0 %v285
        %295 = vmatmul.bf16.gmra.mxu0 %v282
        %v296 = vpop.f32.mrf.mxu0
        %v297 = vadd.f32 0.0, %v296
        %v298 = vpop.f32.mrf.mxu0
        %299 = vdwg.mxu0
        %vm300 = vcmask 130048
        %v301 = vsel %vm300, %v297, -inf
        %302 = vmax.xlane.f32.xlu0 %v301
        %v303 = vpop.xlane.xlu0 %302
        %v304 = vsub.f32 %v297, %v303
        %v305 = vmul.f32 %v304, 1.442695
        %v306 = vpow.pop %v305
        %v307 = vsel %vm300, %v306, 0.0
        %308 = vadd.xlane.f32.xlu0 %v307
        %v309 = vpop.xlane.xlu0 %308
        %v310 = vrcp.pop %v309
        %v311 = vmul.f32 %v306, %v310
        %v312 = vpack.c.bf16 %v311, %v311
        %313 = vrot.lane.b32.xlu0 %v274, 112
        %v314 = vpop.permute.xlu0 %313
        %v317 = vsel %vm300, %v312, 0
        %319 = vmatpush.bf16.msra.mxu0 0
        %320 = vmatpush.bf16.msra.mxu0 0
        %321 = vmatpush.bf16.msra.mxu0 0
        %322 = vmatpush.bf16.msra.mxu0 0
        %323 = vmatpush.bf16.msra.mxu0 0
        %324 = vmatpush.bf16.msra.mxu0 0
        %325 = vmatpush.bf16.msra.mxu0 0
        %326 = vmatpush.bf16.msra.mxu0 %v314
        %327 = vmatmul.bf16.gmra.mxu0 %v317
        %v328 = vpop.f32.mrf.mxu0
        %v329 = vadd.f32 0.0, %v328
        %v330 = vpop.f32.mrf.mxu0
        %331 = vdwg.mxu0
        %v332 = vld [vmem:[#allocation2] sm:$0xff]
        %v333 = vpack.c.bf16 %v329, %v329
        %v335 = vsel %vm280, %v333, 0
        %vm337 = vcmask 1043456
        %v339 = vsel %vm337, %v275, 0
        %341 = vmatpush.bf16.msra.mxu0 0
        %342 = vmatpush.bf16.msra.mxu0 0
        %343 = vmatpush.bf16.msra.mxu0 0
        %344 = vmatpush.bf16.msra.mxu0 0
        %345 = vmatpush.bf16.msra.mxu0 0
        %346 = vmatpush.bf16.msra.mxu0 0
        %347 = vmatpush.bf16.msra.mxu0 0
        %348 = vmatpush.bf16.msra.mxu0 %v339
        %349 = vmatmul.bf16.gmra.mxu0 %v335
        %v350 = vpop.f32.mrf.mxu0
        %v351 = vadd.f32 0.0, %v350
        %v352 = vpop.f32.mrf.mxu0
        %353 = vdwg.mxu0
        %v354 = vadd.f32 %v332, %v351
        %355 = vst.msk [vmem:[#allocation2] sm:$0xff] %vm249, %v354
        %s356 = scalar_lea.vmem [#allocation3], 4
        %v357 = vld [vmem:[%s356] sm:$0xf]
        %v359 = vsel %vm280, %v357, 0
        %361 = vmatpush.bf16.xpose.msra.mxu0 0
        %362 = vmatpush.bf16.xpose.msra.mxu0 0
        %363 = vmatpush.bf16.xpose.msra.mxu0 0
        %364 = vmatpush.bf16.xpose.msra.mxu0 0
        %365 = vmatpush.bf16.xpose.msra.mxu0 0
        %366 = vmatpush.bf16.xpose.msra.mxu0 0
        %367 = vmatpush.bf16.xpose.msra.mxu0 0
        %368 = vmatpush.bf16.xpose.msra.mxu0 %v285
        %369 = vmatmul.bf16.gmra.mxu0 %v359
        %v370 = vpop.f32.mrf.mxu0
        %v371 = vadd.f32 0.0, %v370
        %v372 = vpop.f32.mrf.mxu0
        %373 = vdwg.mxu0
        %v374 = vsel %vm300, %v371, -inf
        %375 = vmax.xlane.f32.xlu0 %v374
        %v376 = vpop.xlane.xlu0 %375
        %v377 = vsub.f32 %v371, %v376
        %v378 = vmul.f32 %v377, 1.442695
        %v379 = vpow.pop %v378
        %v380 = vsel %vm300, %v379, 0.0
        %381 = vadd.xlane.f32.xlu0 %v380
        %v382 = vpop.xlane.xlu0 %381
        %v383 = vrcp.pop %v382
        %v384 = vmul.f32 %v379, %v383
        %v385 = vpack.c.bf16 %v384, %v384
        %v387 = vsel %vm300, %v385, 0
        %389 = vmatpush.bf16.msra.mxu0 0
        %390 = vmatpush.bf16.msra.mxu0 0
        %391 = vmatpush.bf16.msra.mxu0 0
        %392 = vmatpush.bf16.msra.mxu0 0
        %393 = vmatpush.bf16.msra.mxu0 0
        %394 = vmatpush.bf16.msra.mxu0 0
        %395 = vmatpush.bf16.msra.mxu0 0
        %396 = vmatpush.bf16.msra.mxu0 %v314
        %397 = vmatmul.bf16.gmra.mxu0 %v387
        %v398 = vpop.f32.mrf.mxu0
        %v399 = vadd.f32 0.0, %v398
        %v400 = vpop.f32.mrf.mxu0
        %401 = vdwg.mxu0
        %s402 = scalar_lea.vmem [#allocation2], 8
        %v403 = vld [vmem:[%s402] sm:$0xff]
        %v404 = vpack.c.bf16 %v399, %v399
        %v406 = vsel %vm280, %v404, 0
        %408 = vmatpush.bf16.msra.mxu0 0
        %409 = vmatpush.bf16.msra.mxu0 0
        %410 = vmatpush.bf16.msra.mxu0 0
        %411 = vmatpush.bf16.msra.mxu0 0
        %412 = vmatpush.bf16.msra.mxu0 0
        %413 = vmatpush.bf16.msra.mxu0 0
        %414 = vmatpush.bf16.msra.mxu0 0
        %415 = vmatpush.bf16.msra.mxu0 %v339
        %416 = vmatmul.bf16.gmra.mxu0 %v406
        %v417 = vpop.f32.mrf.mxu0
        %v418 = vadd.f32 0.0, %v417
        %v419 = vpop.f32.mrf.mxu0
        %420 = vdwg.mxu0
        %v421 = vadd.f32 %v403, %v418
        %422 = vst.msk [vmem:[%s402] sm:$0xff] %vm249, %v421
        %p423 = scmp.eq.s32.totalorder %s22, 3
        // Predicated region
        $region37: #{mllama_vision_sdpa_attention.1} parent=31 // pred_check
          %p424 = pneg %p423
        $region38: #{mllama_vision_sdpa_attention.1} parent=31 // pred_check_branch
          %426 = sbr.rel (%p424) target = $region40
        $region39: #{mllama_vision_sdpa_attention.1} parent=31 // pred_region
          %v427 = vld [vmem:[#allocation2] sm:$0xff]
          %v428 = vld [vmem:[#allocation2 + $0x8] sm:$0xff]
          %429 = vst.msk [vmem:[%s203] sm:$0xff] %vm249, %v427
          %430 = vst.msk [vmem:[%s203 + $0x8] sm:$0xff] %vm249, %v428
        $region40: #{mllama_vision_sdpa_attention.1} parent=31 // pred_fallthru
          _
        %s431 = sand.u32 %s115, 1
        %s432 = scalar_lea.sflag [#allocation5], %s431
        %s433 = sand.u32 %s115, 1
        %s434 = smul.addr %s433, 16
        %s435 = scalar_lea.vmem [#allocation4], %s434
        // Predicated region
        $region41: #{mllama_vision_sdpa_attention.1} parent=31 // pred_check
          %p436 = pneg %p125
        $region42: #{mllama_vision_sdpa_attention.1} parent=31 // pred_check_branch
          %438 = sbr.rel (%p436) target = $region44
        $region43: #{mllama_vision_sdpa_attention.1} parent=31 // pred_region
          %440 = vsyncadd %s432, 0
          %s441 = smul.addr %s21, 2
          %s442 = smul.addr %s441, 8
          %s443 = scalar_lea.hbm %s3, %s442
          %s444 = sshll.u32 %s435, 4
          %s445 = int_to_ptr.vmem [resolvable:$true] %s444
          %s446 = sshll.u32 %s443, 4
          %s447 = int_to_ptr.hbm [resolvable:$true] %s446
          %452 = dma.vmem_to_hbm [thread:$0]  %s445, 256, %s447, %s432, 128, 128, 8
        $region44: #{mllama_vision_sdpa_attention.1} parent=31 // pred_fallthru
          _
      $region32: #{mllama_vision_sdpa_attention.1} parent=5 // pred_fallthru
        _
      %p453 = scmp.le.s32.totalorder 2, %s12
      // Predicated region
      $region45: #{mllama_vision_sdpa_attention.1} parent=5 // pred_check
        %p454 = pneg %p453
      $region46: #{mllama_vision_sdpa_attention.1} parent=5 // pred_check_branch
        %456 = sbr.rel (%p454) target = $region48
      $region47: #{mllama_vision_sdpa_attention.1} parent=5 // pred_region
        %s457 = ssub.s32 %s12, 2
        // Predicated region
        $region49: #{mllama_vision_sdpa_attention.1} parent=47 // pred_check
          %p458 = pneg %p131
        $region50: #{mllama_vision_sdpa_attention.1} parent=47 // pred_check_branch
          %460 = sbr.rel (%p458) target = $region52
        $region51: #{mllama_vision_sdpa_attention.1} parent=47 // pred_region
          %s461 = sand.u32 %s116, 1
          %s462 = scalar_lea.sflag [#allocation5], %s461
          %s463 = sand.u32 %s116, 1
          %s464 = smul.addr %s463, 16
          %s465 = scalar_lea.vmem [#allocation4], %s464
          %467 = dma.done %s462, 256
        $region52: #{mllama_vision_sdpa_attention.1} parent=47 // pred_fallthru
          _
      $region48: #{mllama_vision_sdpa_attention.1} parent=5 // pred_fallthru
        _
    $region6: #{mllama_vision_sdpa_attention.1} parent=1 // loop_footer
      %s16 = sadd.s32 1, %s12
    $region7: #{mllama_vision_sdpa_attention.1} parent=1 // loop_footer_branch
      %11 = sbr.rel target = $region3
    $region8: #{mllama_vision_sdpa_attention.1} parent=1 // loop_exit
      _
    %468 = vsyncpa [#allocation5], 1
    %s469 = scalar_lea.sflag [#allocation5], 1
    %470 = vsyncpa %s469, 1

</llo_original>
